<compile_context>
chip_gen: v7x
topology: tpu7x:2x2x1
jax: 0.10.0
libtpu: 0.0.40
codegen_flags: <defaults>
</compile_context>

<pallas_src>
import functools

import jax
import jax.numpy as jnp
from jax.experimental import pallas as pl
from jax.experimental.pallas import tpu as pltpu

_VMEM_LIMIT = 32 * 1024 * 1024     # explicit scoped-VMEM budget (<= physical on v5e/v6e/v7x)
_NEG_INF = -1.0e30                 # finite "minus infinity" -> no -inf - -inf NaNs


def _pick_tile(dim, want, quantum):
    """Largest legal tile <= want: either the full dim, or a quantum-multiple divisor."""
    if dim <= want:
        return dim
    t = (want // quantum) * quantum
    while t >= quantum:
        if dim % t == 0:
            return t
        t -= quantum
    return dim  # fall back to the full (always legal) block


# --------------------------- tiled NT matmul ------------------------------- #
# y = x @ w.T with w stored in nn.Linear's (out_features, in_features) layout.

def _matmul_nt_kernel(x_ref, w_ref, o_ref, acc_ref):
    @pl.when(pl.program_id(2) == 0)
    def _init():
        acc_ref[...] = jnp.zeros_like(acc_ref)

    acc_ref[...] += jax.lax.dot_general(
        x_ref[...], w_ref[...],
        dimension_numbers=(((1,), (1,)), ((), ())),
        preferred_element_type=jnp.float32)

    @pl.when(pl.program_id(2) == pl.num_programs(2) - 1)
    def _finalize():
        o_ref[...] = acc_ref[...].astype(o_ref.dtype)


def matmul_nt(x, w, *, out_dtype=None, tiles=(512, 512, 512)):
    """x: (M, K), w: (N, K)  ->  (M, N) == x @ w.T, f32 accumulation."""
    M, K = x.shape
    N, Kw = w.shape
    assert K == Kw
    out_dtype = out_dtype or x.dtype
    tm = _pick_tile(M, tiles[0], 8)
    tn = _pick_tile(N, tiles[1], 128)
    tk = _pick_tile(K, tiles[2], 128)
    grid = (M // tm, N // tn, K // tk)
    return pl.pallas_call(
        _matmul_nt_kernel,
        out_shape=jax.ShapeDtypeStruct((M, N), out_dtype),
        grid=grid,
        in_specs=[
            pl.BlockSpec((tm, tk), lambda i, j, k: (i, k)),
            pl.BlockSpec((tn, tk), lambda i, j, k: (j, k)),
        ],
        out_specs=pl.BlockSpec((tm, tn), lambda i, j, k: (i, j)),
        scratch_shapes=[pltpu.VMEM((tm, tn), jnp.float32)],
        compiler_params=pltpu.CompilerParams(
            dimension_semantics=("parallel", "parallel", "arbitrary"),
            vmem_limit_bytes=_VMEM_LIMIT),
    )(x, w)


# -------------------- flash attention + fused rotary ----------------------- #

def _flash_attn_kernel(q_ref, k_ref, v_ref, cq_ref, sq_ref, ck_ref, sk_ref,
                       o_ref, qrot_ref, m_ref, l_ref, acc_ref,
                       *, scale, window, repeats, tq, tk, compute_dtype):
    D = q_ref.shape[-1]
    kv = pl.program_id(3)
    q0 = pl.program_id(2) * tq
    k0 = kv * tk

    # Signed pair-swap permutation for interleaved rotary:
    #   (x @ P)[2i] = -x[2i+1],  (x @ P)[2i+1] = x[2i]
    ri = jax.lax.broadcasted_iota(jnp.int32, (D, D), 0)
    ci = jax.lax.broadcasted_iota(jnp.int32, (D, D), 1)
    pswap = jnp.where((ri == ci + 1) & (ci % 2 == 0), -1.0,
                      jnp.where((ri + 1 == ci) & (ri % 2 == 0), 1.0, 0.0)
                      ).astype(jnp.float32)

    @pl.when(kv == 0)
    def _init():
        m_ref[...] = jnp.full_like(m_ref, _NEG_INF)
        l_ref[...] = jnp.zeros_like(l_ref)
        acc_ref[...] = jnp.zeros_like(acc_ref)
        cq = cq_ref[...]
        sq = sq_ref[...]
        # Rotate the `repeats` grouped query heads once per q tile; cache in VMEM.
        for r in range(repeats):
            qr = q_ref[0, r].astype(jnp.float32)                      # (tq, D)
            qrot = qr * cq + jnp.dot(qr, pswap,
                                     preferred_element_type=jnp.float32) * sq
            qrot_ref[r * tq:(r + 1) * tq, :] = qrot.astype(qrot_ref.dtype)

    # Skip kv tiles that are entirely masked (future, or outside the sliding window).
    causal_ok = k0 <= q0 + (tq - 1)
    window_ok = (q0 - (k0 + (tk - 1))) <= (window - 1)

    @pl.when(jnp.logical_and(causal_ok, window_ok))
    def _compute():
        # Rotary for this K tile (recomputed per q tile; cheap vs the score matmul).
        kt = k_ref[0, 0].astype(jnp.float32)                          # (tk, D)
        krot = kt * ck_ref[...] + jnp.dot(kt, pswap,
                                          preferred_element_type=jnp.float32) * sk_ref[...]
        krot = krot.astype(compute_dtype)
        vt = v_ref[0, 0].astype(compute_dtype)

        qrot = qrot_ref[...]                                          # (R*tq, D)
        s = jax.lax.dot_general(qrot, krot, (((1,), (1,)), ((), ())),
                                preferred_element_type=jnp.float32) * scale

        # Causal + sliding-window mask built from iota and program ids.
        qpos = q0 + jax.lax.broadcasted_iota(jnp.int32, (repeats * tq, tk), 0) % tq
        kpos = k0 + jax.lax.broadcasted_iota(jnp.int32, (repeats * tq, tk), 1)
        ok = (kpos <= qpos) & (qpos - kpos < window)
        s = s + jnp.where(ok, 0.0, _NEG_INF)

        m_prev = m_ref[...]
        m_new = jnp.maximum(m_prev, jnp.max(s, axis=-1, keepdims=True))
        alpha = jnp.exp(m_prev - m_new)
        p = jnp.exp(s - m_new)
        l_ref[...] = l_ref[...] * alpha + jnp.sum(p, axis=-1, keepdims=True)
        acc_ref[...] = acc_ref[...] * alpha + jnp.dot(
            p.astype(compute_dtype), vt, preferred_element_type=jnp.float32)
        m_ref[...] = m_new

    @pl.when(kv == pl.num_programs(3) - 1)
    def _finalize():
        out = acc_ref[...] * pl.reciprocal(l_ref[...], approx=True)
        for r in range(repeats):
            o_ref[0, r] = out[r * tq:(r + 1) * tq, :].astype(o_ref.dtype)


def flash_attention(q, k, v, cos_full, sin_full, *, scale, window, repeats,
                    compute_dtype, out_dtype=None, tiles=(256, 256)):
    """q: (B, H, S, D); k, v: (B, KVH, S, D); cos/sin_full: (S, D). -> (B, H, S, D)."""
    B, H, S, D = q.shape
    KVH = k.shape[1]
    assert H == KVH * repeats
    out_dtype = out_dtype or q.dtype
    tq = _pick_tile(S, tiles[0], 8)
    tk = _pick_tile(S, tiles[1], 8)
    grid = (B, KVH, S // tq, S // tk)
    kernel = functools.partial(_flash_attn_kernel, scale=scale, window=window,
                               repeats=repeats, tq=tq, tk=tk,
                               compute_dtype=compute_dtype)
    return pl.pallas_call(
        kernel,
        out_shape=jax.ShapeDtypeStruct((B, H, S, D), out_dtype),
        grid=grid,
        in_specs=[
            # q: all `repeats` query heads of kv-group g
            pl.BlockSpec((1, repeats, tq, D), lambda b, g, qi, kv: (b, g, qi, 0)),
            # k, v: ONE tile per kv head, shared by the whole group (GQA reuse)
            pl.BlockSpec((1, 1, tk, D), lambda b, g, qi, kv: (b, g, kv, 0)),
            pl.BlockSpec((1, 1, tk, D), lambda b, g, qi, kv: (b, g, kv, 0)),
            # rotary tables for the q rows and the k rows of this step
            pl.BlockSpec((tq, D), lambda b, g, qi, kv: (qi, 0)),
            pl.BlockSpec((tq, D), lambda b, g, qi, kv: (qi, 0)),
            pl.BlockSpec((tk, D), lambda b, g, qi, kv: (kv, 0)),
            pl.BlockSpec((tk, D), lambda b, g, qi, kv: (kv, 0)),
        ],
        out_specs=pl.BlockSpec((1, repeats, tq, D), lambda b, g, qi, kv: (b, g, qi, 0)),
        scratch_shapes=[
            pltpu.VMEM((repeats * tq, D), compute_dtype),   # rotated q cache
            pltpu.VMEM((repeats * tq, 1), jnp.float32),     # running max
            pltpu.VMEM((repeats * tq, 1), jnp.float32),     # running denominator
            pltpu.VMEM((repeats * tq, D), jnp.float32),     # output accumulator
        ],
        compiler_params=pltpu.CompilerParams(
            dimension_semantics=("parallel", "parallel", "parallel", "arbitrary"),
            vmem_limit_bytes=_VMEM_LIMIT),
    )(q, k, v, cos_full, sin_full, cos_full, sin_full)


# ------------------------------- forward ----------------------------------- #

def mistral_mha_forward(x, wq, wk, wv, wo, cos, sin, *, n_heads, n_kv_heads,
                        head_dim, sliding_window, compute_dtype=jnp.float32,
                        proj_tiles=(512, 512, 512), attn_tiles=(256, 256)):
    B, S, dim = x.shape
    repeats = n_heads // n_kv_heads
    scale = head_dim ** (-0.5)
    Dq = n_heads * head_dim
    Dkv = n_kv_heads * head_dim

    # Interleave-duplicated rotary tables: cos_full[p, 2i] = cos_full[p, 2i+1] = cos(p * f_i)
    cos_full = jnp.repeat(cos.astype(jnp.float32), 2, axis=-1)        # (S, head_dim)
    sin_full = jnp.repeat(sin.astype(jnp.float32), 2, axis=-1)        # (S, head_dim)

    # Fused QKV projection: one GEMM reads x once; weights stay in (out, in) layout.
    w_qkv = jnp.concatenate([wq, wk, wv], axis=0).astype(compute_dtype)
    xf = x.reshape(B * S, dim).astype(compute_dtype)
    qkv = matmul_nt(xf, w_qkv, out_dtype=compute_dtype, tiles=proj_tiles)

    xq = qkv[:, :Dq].reshape(B, S, n_heads, head_dim)
    xk = qkv[:, Dq:Dq + Dkv].reshape(B, S, n_kv_heads, head_dim)
    xv = qkv[:, Dq + Dkv:].reshape(B, S, n_kv_heads, head_dim)

    # TODO(synk): fold these relayouts into the attention BlockSpecs at head_dim=128.
    q = jnp.transpose(xq, (0, 2, 1, 3))   # (B, H,   S, D)
    k = jnp.transpose(xk, (0, 2, 1, 3))   # (B, KVH, S, D)
    v = jnp.transpose(xv, (0, 2, 1, 3))   # (B, KVH, S, D)

    o = flash_attention(q, k, v, cos_full, sin_full, scale=scale,
                        window=sliding_window, repeats=repeats,
                        compute_dtype=compute_dtype, out_dtype=compute_dtype,
                        tiles=attn_tiles)                              # (B, H, S, D)

    o = jnp.transpose(o, (0, 2, 1, 3)).reshape(B * S, Dq)
    out = matmul_nt(o, wo.astype(compute_dtype), out_dtype=jnp.float32,
                    tiles=proj_tiles)
    return out.reshape(B, S, dim)          # dropout(p=0) == identity


# ----------------------- pure-JAX reference (check) ------------------------ #

def _apply_rotary_ref(x, cos, sin):
    B, S, H, D = x.shape
    x2 = x.astype(jnp.float32).reshape(B, S, H, D // 2, 2)
    xr, xi = x2[..., 0], x2[..., 1]
    c = cos[None, :, None, :]
    s = sin[None, :, None, :]
    out_r = xr * c - xi * s
    out_i = xr * s + xi * c
    return jnp.stack([out_r, out_i], axis=-1).reshape(B, S, H, D).astype(x.dtype)


def reference_forward(x, wq, wk, wv, wo, cos, sin, mask,
                      n_heads, n_kv_heads, head_dim):
    B, S, dim = x.shape
    scale = head_dim ** (-0.5)
    repeats = n_heads // n_kv_heads
    xq = (x @ wq.T).reshape(B, S, n_heads, head_dim)
    xk = (x @ wk.T).reshape(B, S, n_kv_heads, head_dim)
    xv = (x @ wv.T).reshape(B, S, n_kv_heads, head_dim)
    xq = _apply_rotary_ref(xq, cos, sin)
    xk = _apply_rotary_ref(xk, cos, sin)
    key = jnp.repeat(xk, repeats, axis=2)
    val = jnp.repeat(xv, repeats, axis=2)
    q = jnp.transpose(xq, (0, 2, 1, 3))
    k = jnp.transpose(key, (0, 2, 1, 3))
    v = jnp.transpose(val, (0, 2, 1, 3))
    scores = jnp.einsum("bhqd,bhkd->bhqk", q, k) * scale + mask[None, None]
    p = jax.nn.softmax(scores.astype(jnp.float32), axis=-1)
    o = jnp.einsum("bhqk,bhkd->bhqd", p, v)
    o = jnp.transpose(o, (0, 2, 1, 3)).reshape(B, S, n_heads * head_dim)
    return o @ wo.T


# --------------------------------- main ------------------------------------ #

if __name__ == "__main__":
    B, S = 2, 16
    n_heads, n_kv_heads = 4, 2
    head_dim = 32
    dim = 256
    sliding_window = 6
    theta = 10000.0

    key = jax.random.PRNGKey(0)
    kx, kq, kk, kv, ko = jax.random.split(key, 5)
    x = jax.random.normal(kx, (B, S, dim), dtype=jnp.float32)
    wq = 0.02 * jax.random.normal(kq, (n_heads * head_dim, dim), dtype=jnp.float32)
    wk = 0.02 * jax.random.normal(kk, (n_kv_heads * head_dim, dim), dtype=jnp.float32)
    wv = 0.02 * jax.random.normal(kv, (n_kv_heads * head_dim, dim), dtype=jnp.float32)
    wo = 0.02 * jax.random.normal(ko, (dim, n_heads * head_dim), dtype=jnp.float32)

    # Rotary frequencies (Mistral/LLaMA style), prefill positions = arange(S).
    positions = jnp.arange(S)
    inv_freq = 1.0 / (theta ** (jnp.arange(0, head_dim, 2, dtype=jnp.float32) / head_dim))
    angles = positions.astype(jnp.float32)[:, None] * inv_freq[None, :]   # (S, D/2)
    cos, sin = jnp.cos(angles), jnp.sin(angles)

    # Reference mask: causal + sliding-window, additive (-inf disallowed).
    i = jnp.arange(S)[:, None]
    j = jnp.arange(S)[None, :]
    allowed = (j <= i) & (i - j < sliding_window)
    mask = jnp.where(allowed, 0.0, -jnp.inf).astype(jnp.float32)

    ref = reference_forward(x, wq, wk, wv, wo, cos, sin, mask,
                            n_heads, n_kv_heads, head_dim)

    # Small tiles so the multi-block matmul grid, K accumulation, multiple
    # kv tiles, tile skipping and the online-softmax carry are all exercised.
    out_f32 = mistral_mha_forward(
        x, wq, wk, wv, wo, cos, sin,
        n_heads=n_heads, n_kv_heads=n_kv_heads, head_dim=head_dim,
        sliding_window=sliding_window, compute_dtype=jnp.float32,
        proj_tiles=(16, 128, 128), attn_tiles=(8, 8))
    out_f32 = jax.block_until_ready(out_f32)
    assert out_f32.shape == (B, S, dim)
    assert jnp.allclose(out_f32, ref, atol=2e-3, rtol=2e-3), "f32 mismatch vs reference"

    # bf16 MXU-input path (f32 softmax + accumulation), looser tolerance.
    out_bf16 = mistral_mha_forward(
        x, wq, wk, wv, wo, cos, sin,
        n_heads=n_heads, n_kv_heads=n_kv_heads, head_dim=head_dim,
        sliding_window=sliding_window, compute_dtype=jnp.bfloat16,
        proj_tiles=(16, 128, 128), attn_tiles=(8, 8))
    out_bf16 = jax.block_until_ready(out_bf16)
    assert out_bf16.shape == (B, S, dim)
    assert jnp.allclose(out_bf16, ref, atol=3e-2, rtol=3e-2), "bf16 mismatch vs reference"

    print("KERNEL_OK")
</pallas_src>

<mosaic_0001>
module attributes {stable_mosaic.version = 11 : i64} {
  func.func @_matmul_nt_kernel(%arg0: i32, %arg1: i32, %arg2: i32, %arg3: memref<16x128xf32, #tpu.memory_space<vmem>>, %arg4: memref<128x128xf32, #tpu.memory_space<vmem>>, %arg5: memref<16x128xf32, #tpu.memory_space<vmem>>, %arg6: memref<16x128xf32, #tpu.memory_space<vmem>>) attributes {dimension_semantics = [#tpu.dimension_semantics<parallel>, #tpu.dimension_semantics<parallel>, #tpu.dimension_semantics<arbitrary>], iteration_bounds = array<i64: 2, 2, 2>, scalar_prefetch = 0 : i64, scratch_operands = 1 : i64, tpu.core_type = #tpu.core_type<tc>, window_params = [{transform_indices = @transform_0, window_bounds = array<i64: 16, 128>}, {transform_indices = @transform_1, window_bounds = array<i64: 128, 128>}, {transform_indices = @transform_2, window_bounds = array<i64: 16, 128>}]} {
    %c0_i32 = arith.constant 0 : i32
    %0 = arith.cmpi eq, %arg2, %c0_i32 : i32
    %1 = arith.extui %0 : i1 to i32
    %c0_i32_0 = arith.constant 0 : i32
    %2 = arith.cmpi ne, %1, %c0_i32_0 : i32
    scf.if %2 {
      %cst_9 = arith.constant 0.000000e+00 : f32
      %12 = vector.broadcast %cst_9 : f32 to vector<16x128xf32>
      %c0_10 = arith.constant 0 : index
      %c0_11 = arith.constant 0 : index
      %13 = vector.load %arg6[%c0_10, %c0_11] : memref<16x128xf32, #tpu.memory_space<vmem>>, vector<16x128xf32>
      tpu.vector_store %arg6[%c0_10, %c0_11], %12 {strides = array<i32>} : memref<16x128xf32, #tpu.memory_space<vmem>>, vector<16x128xf32>,
    } else {
    }
    %c0 = arith.constant 0 : index
    %c0_1 = arith.constant 0 : index
    %3 = vector.load %arg6[%c0, %c0_1] : memref<16x128xf32, #tpu.memory_space<vmem>>, vector<16x128xf32>
    %c0_2 = arith.constant 0 : index
    %c0_3 = arith.constant 0 : index
    %4 = vector.load %arg3[%c0_2, %c0_3] : memref<16x128xf32, #tpu.memory_space<vmem>>, vector<16x128xf32>
    %c0_4 = arith.constant 0 : index
    %c0_5 = arith.constant 0 : index
    %5 = vector.load %arg4[%c0_4, %c0_5] : memref<128x128xf32, #tpu.memory_space<vmem>>, vector<128x128xf32>
    %cst = arith.constant dense<0.000000e+00> : vector<16x128xf32>
    %6 = tpu.matmul %4, %5, %cst {dimension_numbers = #tpu.dot_dimension_numbers<[1], [1], [0], [0], [0, 0, 1, 0], [], []>} : vector<16x128xf32>, vector<128x128xf32>, vector<16x128xf32> -> vector<16x128xf32>
    %7 = arith.addf %3, %6 : vector<16x128xf32>
    %c0_6 = arith.constant 0 : index
    %c0_7 = arith.constant 0 : index
    %8 = vector.load %arg6[%c0_6, %c0_7] : memref<16x128xf32, #tpu.memory_space<vmem>>, vector<16x128xf32>
    tpu.vector_store %arg6[%c0_6, %c0_7], %7 {strides = array<i32>} : memref<16x128xf32, #tpu.memory_space<vmem>>, vector<16x128xf32>,
    %c1_i32 = arith.constant 1 : i32
    %9 = arith.cmpi eq, %arg2, %c1_i32 : i32
    %10 = arith.extui %9 : i1 to i32
    %c0_i32_8 = arith.constant 0 : i32
    %11 = arith.cmpi ne, %10, %c0_i32_8 : i32
    scf.if %11 {
      %c0_9 = arith.constant 0 : index
      %c0_10 = arith.constant 0 : index
      %12 = vector.load %arg6[%c0_9, %c0_10] : memref<16x128xf32, #tpu.memory_space<vmem>>, vector<16x128xf32>
      %c0_11 = arith.constant 0 : index
      %c0_12 = arith.constant 0 : index
      %13 = vector.load %arg5[%c0_11, %c0_12] : memref<16x128xf32, #tpu.memory_space<vmem>>, vector<16x128xf32>
      tpu.vector_store %arg5[%c0_11, %c0_12], %12 {strides = array<i32>} : memref<16x128xf32, #tpu.memory_space<vmem>>, vector<16x128xf32>,
    } else {
    }
    return
  }
  func.func @transform_0(%arg0: i32, %arg1: i32, %arg2: i32) -> (i32, i32) {
    %c0_i32 = arith.constant 0 : i32
    return %arg0, %arg2 : i32, i32
  }
  func.func @transform_1(%arg0: i32, %arg1: i32, %arg2: i32) -> (i32, i32) {
    %c0_i32 = arith.constant 0 : i32
    return %arg1, %arg2 : i32, i32
  }
  func.func @transform_2(%arg0: i32, %arg1: i32, %arg2: i32) -> (i32, i32) {
    %c0_i32 = arith.constant 0 : i32
    return %arg0, %arg1 : i32, i32
  }
}

</mosaic_0001>

<llo_original>
// kernel: tpu_custom_call.1
$region0: #{tpu_custom_call.1}
  #allocation0 [shape = 'u32[]', space=smem, size = 0x4, offset = 0x4, fixed_abs, tag = 'smem constant byte address 0x4 - core index']
  #allocation1 [shape = 'u32[144,128]{1,0:T(1,128)}', space=vmem, size = 0x12000, scoped, tag = 'internal scratch']
  #allocation2 [shape = 'f32[16,128]{1,0:T(8,128)}', space=vmem, size = 0x2000, scoped, tag = 'scratch operand']
  %s0 = inlined_call_operand.hbm [shape: f32[32,256], index: 0, kind: input, shape index: {}]
  %s1 = inlined_call_operand.hbm [shape: f32[256,256], index: 1, kind: input, shape index: {}]
  %s2 = inlined_call_operand.hbm [shape: f32[32,256], index: 2, kind: output, shape index: {}]
  %s3 = sld [smem:[#allocation0]]
  $region57: #{tpu_custom_call.1} parent=0
    _
  %s5 = ssub.s32 1, %s3
  %s6 = scalar_select 0, %s5, %s3
  $region1: #{tpu_custom_call.1} parent=0
    #allocation3 [shape = 'u8[16384]{0}', space=vmem, size = 0x4000, scoped, tag = 'input window, operand 0']
    #allocation4 [shape = 's32[2]{0}', space=sflag, size = 0x8, scoped, tag = 'scoped memory for tpu_custom_call.1']
    #allocation5 [shape = 's32[2]{0}', space=sflag, size = 0x8, scoped, tag = 'scoped memory for tpu_custom_call.1']
    #allocation6 [shape = 'u8[131072]{0}', space=vmem, size = 0x20000, scoped, tag = 'input window, operand 1']
    #allocation7 [shape = 's32[2]{0}', space=sflag, size = 0x8, scoped, tag = 'scoped memory for tpu_custom_call.1']
    #allocation8 [shape = 'u8[16384]{0}', space=vmem, size = 0x4000, scoped, tag = 'output window, operand 0']
    %7 = vsyncpa [#allocation4], 0
    %s8 = scalar_lea.sflag [#allocation4], 1
    %9 = vsyncpa %s8, 0
    %10 = vsyncpa [#allocation7], 0
    %s11 = scalar_lea.sflag [#allocation7], 1
    %12 = vsyncpa %s11, 0
    %13 = vsyncpa [#allocation5], 0
    %s14 = scalar_lea.sflag [#allocation5], 1
    %15 = vsyncpa %s14, 0
    loop: start=0, step=1, limit=10
    $region2: #{tpu_custom_call.1} parent=1 // loop_pre_header
      _
    $region3: #{tpu_custom_call.1} parent=1 // loop_header
      %s17 = sphi 0, %s21
      %p18 = scmp.ge.s32.totalorder %s17, 10
      %s24 = sphi 0, %s43
      %s25 = sphi 0, %s39
      %s26 = sphi 0, %s35
      %s27 = sphi 0, %s24
      %s28 = sphi 0, %s25
      %s29 = sphi 0, %s26
      %s30 = sphi 0, %s27
      %s31 = sphi 0, %s28
      %s32 = sphi 0, %s29
      %s48 = sphi 0, %s50
      %s51 = sphi 0, %s48
      %s52 = sphi 0, %s51
      %s68 = sphi 0, %s52
      %s76 = sphi 0, %s78
      %s79 = sphi 0, %s76
      %s80 = sphi 0, %s79
      %s96 = sphi 0, %s80
      %s104 = sphi 0, %s106
      %s107 = sphi 0, %s104
      %s108 = sphi 0, %s107
      %s124 = sphi 0, %s108
    $region4: #{tpu_custom_call.1} parent=1 // loop_header_branch
      %20 = sbr.rel (%p18) target = $region8
    $region5: #{tpu_custom_call.1} parent=1 // loop_body
      %s22 = ssub.s32 %s17, 1
      %s23 = ssub.s32 %s17, 2
      %s33 = sadd.s32 1, %s26
      %p34 = scmp.ge.s32.totalorder %s33, 2
      %s35 = scalar_select %p34, 0, %s33
      %s36 = sadd.s32 1, %s25
      %s37 = scalar_select %p34, %s36, %s25
      %p38 = scmp.ge.s32.totalorder %s37, 2
      %s39 = scalar_select %p38, 0, %s37
      %s40 = sadd.s32 1, %s24
      %s41 = scalar_select %p38, %s40, %s24
      %p42 = scmp.ge.s32.totalorder %s41, 2
      %s43 = scalar_select %p42, 0, %s41
      %s44 = ssub.s32 %s24, %s43
      %s45 = ssub.s32 %s26, %s35
      %s46 = sor.u32 %s44, %s45
      %p47 = scmp.eq.s32.totalorder %s46, 0
      %s49 = sadd.s32 %s48, 1
      %s50 = scalar_select %p47, %s48, %s49
      %p53 = pneg %p47
      %p54 = scmp.eq.s32.totalorder %s17, 7
      %p55 = por %p53, %p54
      %p56 = scmp.ne.s32.totalorder %s48, %s51
      %p57 = scmp.eq.s32.totalorder %s17, 0
      %p58 = por %p56, %p57
      %p59 = scmp.ne.s32.totalorder %s48, %s51
      %p60 = scmp.eq.s32.totalorder %s22, 7
      %p61 = por %p59, %p60
      %p62 = scmp.ne.s32.totalorder %s51, %s52
      %p63 = scmp.eq.s32.totalorder %s22, 0
      %p64 = por %p62, %p63
      %p65 = scmp.ne.s32.totalorder %s51, %s52
      %p66 = scmp.eq.s32.totalorder %s23, 7
      %p67 = por %p65, %p66
      %p69 = scmp.ne.s32.totalorder %s52, %s68
      %p70 = scmp.eq.s32.totalorder %s23, 0
      %p71 = por %p69, %p70
      %s72 = ssub.s32 %s25, %s39
      %s73 = ssub.s32 %s26, %s35
      %s74 = sor.u32 %s72, %s73
      %p75 = scmp.eq.s32.totalorder %s74, 0
      %s77 = sadd.s32 %s76, 1
      %s78 = scalar_select %p75, %s76, %s77
      %p81 = pneg %p75
      %p82 = scmp.eq.s32.totalorder %s17, 7
      %p83 = por %p81, %p82
      %p84 = scmp.ne.s32.totalorder %s76, %s79
      %p85 = scmp.eq.s32.totalorder %s17, 0
      %p86 = por %p84, %p85
      %p87 = scmp.ne.s32.totalorder %s76, %s79
      %p88 = scmp.eq.s32.totalorder %s22, 7
      %p89 = por %p87, %p88
      %p90 = scmp.ne.s32.totalorder %s79, %s80
      %p91 = scmp.eq.s32.totalorder %s22, 0
      %p92 = por %p90, %p91
      %p93 = scmp.ne.s32.totalorder %s79, %s80
      %p94 = scmp.eq.s32.totalorder %s23, 7
      %p95 = por %p93, %p94
      %p97 = scmp.ne.s32.totalorder %s80, %s96
      %p98 = scmp.eq.s32.totalorder %s23, 0
      %p99 = por %p97, %p98
      %s100 = ssub.s32 %s24, %s43
      %s101 = ssub.s32 %s25, %s39
      %s102 = sor.u32 %s100, %s101
      %p103 = scmp.eq.s32.totalorder %s102, 0
      %s105 = sadd.s32 %s104, 1
      %s106 = scalar_select %p103, %s104, %s105
      %p109 = pneg %p103
      %p110 = scmp.eq.s32.totalorder %s17, 7
      %p111 = por %p109, %p110
      %p112 = scmp.ne.s32.totalorder %s104, %s107
      %p113 = scmp.eq.s32.totalorder %s17, 0
      %p114 = por %p112, %p113
      %p115 = scmp.ne.s32.totalorder %s104, %s107
      %p116 = scmp.eq.s32.totalorder %s22, 7
      %p117 = por %p115, %p116
      %p118 = scmp.ne.s32.totalorder %s107, %s108
      %p119 = scmp.eq.s32.totalorder %s22, 0
      %p120 = por %p118, %p119
      %p121 = scmp.ne.s32.totalorder %s107, %s108
      %p122 = scmp.eq.s32.totalorder %s23, 7
      %p123 = por %p121, %p122
      %p125 = scmp.ne.s32.totalorder %s108, %s124
      %p126 = scmp.eq.s32.totalorder %s23, 0
      %p127 = por %p125, %p126
      %p128 = scmp.le.s32.totalorder 1, %s17
      %p129 = scmp.lt.s32.totalorder %s17, 9
      %p130 = pnand %p128, %p129
      %p131 = pneg %p130
      // Predicated region
      $region9: #{tpu_custom_call.1} parent=5 // pred_check
        _
      $region10: #{tpu_custom_call.1} parent=5 // pred_check_branch
        %133 = sbr.rel (%p130) target = $region12
      $region11: #{tpu_custom_call.1} parent=5 // pred_region
        %s134 = ssub.s32 %s17, 1
      $region12: #{tpu_custom_call.1} parent=5 // pred_fallthru
        _
      %p135 = scmp.lt.s32.totalorder %s17, 8
      // Predicated region
      $region13: #{tpu_custom_call.1} parent=5 // pred_check
        %p136 = pneg %p135
      $region14: #{tpu_custom_call.1} parent=5 // pred_check_branch
        %138 = sbr.rel (%p136) target = $region16
      $region15: #{tpu_custom_call.1} parent=5 // pred_region
        // Predicated region
        $region17: #{tpu_custom_call.1} parent=15 // pred_check
          %p139 = pneg %p58
        $region18: #{tpu_custom_call.1} parent=15 // pred_check_branch
          %141 = sbr.rel (%p139) target = $region20
        $region19: #{tpu_custom_call.1} parent=15 // pred_region
          %s142 = sand.u32 %s48, 1
          %s143 = scalar_lea.sflag [#allocation4], %s142
          %s144 = sand.u32 %s48, 1
          %s145 = smul.addr %s144, 16
          %s146 = scalar_lea.vmem [#allocation3], %s145
          %s147 = smul.u32 2, %s24
          %s149 = ssub.s32 256, 256
          %150 = vsyncadd %s143, %s149
          %s151 = smul.addr %s147, 2
          %s152 = sadd.s32 %s26, %s151
          %s153 = smul.addr %s152, 128
          %s154 = scalar_lea.hbm %s0, %s153
          %s155 = sshll.u32 %s146, 4
          %s156 = int_to_ptr.vmem [resolvable:$true] %s155
          %161 = dma.hbm_to_vmem [thread:$0]  %s154, 256, %s156, %s143, 256, 128, 8
        $region20: #{tpu_custom_call.1} parent=15 // pred_fallthru
          _
        // Predicated region
        $region21: #{tpu_custom_call.1} parent=15 // pred_check
          %p162 = pneg %p86
        $region22: #{tpu_custom_call.1} parent=15 // pred_check_branch
          %164 = sbr.rel (%p162) target = $region24
        $region23: #{tpu_custom_call.1} parent=15 // pred_region
          %s165 = sand.u32 %s76, 1
          %s166 = scalar_lea.sflag [#allocation7], %s165
          %s167 = sand.u32 %s76, 1
          %s168 = smul.addr %s167, 128
          %s169 = scalar_lea.vmem [#allocation6], %s168
          %s170 = smul.u32 16, %s25
          %s172 = ssub.s32 2048, 2048
          %173 = vsyncadd %s166, %s172
          %s174 = smul.addr %s170, 2
          %s175 = sadd.s32 %s26, %s174
          %s176 = smul.addr %s175, 128
          %s177 = scalar_lea.hbm %s1, %s176
          %s178 = sshll.u32 %s169, 4
          %s179 = int_to_ptr.vmem [resolvable:$true] %s178
          %184 = dma.hbm_to_vmem [thread:$0]  %s177, 2048, %s179, %s166, 256, 128, 8
        $region24: #{tpu_custom_call.1} parent=15 // pred_fallthru
          _
      $region16: #{tpu_custom_call.1} parent=5 // pred_fallthru
        _
      %p185 = scmp.le.s32.totalorder 1, %s17
      %p186 = scmp.lt.s32.totalorder %s17, 9
      %p187 = pnand %p185, %p186
      %p188 = pneg %p187
      // Predicated region
      $region25: #{tpu_custom_call.1} parent=5 // pred_check
        _
      $region26: #{tpu_custom_call.1} parent=5 // pred_check_branch
        %190 = sbr.rel (%p187) target = $region28
      $region27: #{tpu_custom_call.1} parent=5 // pred_region
        %s191 = ssub.s32 %s17, 1
        %s192 = sand.u32 %s51, 1
        %s193 = scalar_lea.sflag [#allocation4], %s192
        %s194 = sand.u32 %s51, 1
        %s195 = smul.addr %s194, 16
        %s196 = scalar_lea.vmem [#allocation3], %s195
        // Predicated region
        $region29: #{tpu_custom_call.1} parent=27 // pred_check
          %p197 = pneg %p64
        $region30: #{tpu_custom_call.1} parent=27 // pred_check_branch
          %199 = sbr.rel (%p197) target = $region32
        $region31: #{tpu_custom_call.1} parent=27 // pred_region
          %200 = dma.done %s193, 256
        $region32: #{tpu_custom_call.1} parent=27 // pred_fallthru
          _
        %s201 = sand.u32 %s79, 1
        %s202 = scalar_lea.sflag [#allocation7], %s201
        %s203 = sand.u32 %s79, 1
        %s204 = smul.addr %s203, 128
        %s205 = scalar_lea.vmem [#allocation6], %s204
        // Predicated region
        $region33: #{tpu_custom_call.1} parent=27 // pred_check
          %p206 = pneg %p92
        $region34: #{tpu_custom_call.1} parent=27 // pred_check_branch
          %208 = sbr.rel (%p206) target = $region36
        $region35: #{tpu_custom_call.1} parent=27 // pred_region
          %209 = dma.done %s202, 2048
        $region36: #{tpu_custom_call.1} parent=27 // pred_fallthru
          _
        %s210 = sand.u32 %s51, 1
        %s211 = scalar_lea.sflag [#allocation4], %s210
        %s212 = sand.u32 %s51, 1
        %s213 = smul.addr %s212, 16
        %s214 = scalar_lea.vmem [#allocation3], %s213
        %p215 = pneg %p64
        %p216 = pneg %p61
        %s217 = sand.u32 %s79, 1
        %s218 = scalar_lea.sflag [#allocation7], %s217
        %s219 = sand.u32 %s79, 1
        %s220 = smul.addr %s219, 128
        %s221 = scalar_lea.vmem [#allocation6], %s220
        %p222 = pneg %p92
        %p223 = pneg %p89
        %p224 = pneg %p120
        %p225 = pneg %p117
        %s226 = sand.u32 %s107, 1
        %s227 = scalar_lea.sflag [#allocation5], %s226
        %s228 = sand.u32 %s107, 1
        %s229 = smul.addr %s228, 16
        %s230 = scalar_lea.vmem [#allocation8], %s229
        %s231 = smul.u32 2, %s27
        %s232 = smul.u32 16, %s28
        %s233 = smul.u32 2, %s27
        %p234 = scmp.eq.s32.totalorder %s29, 0
        // Predicated region
        $region37: #{tpu_custom_call.1} parent=27 // pred_check
          %p235 = pneg %p234
        $region38: #{tpu_custom_call.1} parent=27 // pred_check_branch
          %237 = sbr.rel (%p235) target = $region40
        $region39: #{tpu_custom_call.1} parent=27 // pred_region
          %238 = vst [vmem:[#allocation2] sm:$0xff] 0.0
          %239 = vst [vmem:[#allocation2 + $0x8] sm:$0xff] 0.0
        $region40: #{tpu_custom_call.1} parent=27 // pred_fallthru
          _
        %v240 = vld [vmem:[#allocation2] sm:$0xff]
        %v241 = vld [vmem:[#allocation2 + $0x8] sm:$0xff]
        %v242 = vld [vmem:[%s196] sm:$0xff]
        %v243 = vld [vmem:[%s196 + $0x8] sm:$0xff]
        %v244 = vld [vmem:[%s205] sm:$0xff]
        %v245 = vld [vmem:[%s205 + $0x8] sm:$0xff]
        %v246 = vld [vmem:[%s205 + $0x10] sm:$0xff]
        %v247 = vld [vmem:[%s205 + $0x18] sm:$0xff]
        %v248 = vld [vmem:[%s205 + $0x20] sm:$0xff]
        %v249 = vld [vmem:[%s205 + $0x28] sm:$0xff]
        %v250 = vld [vmem:[%s205 + $0x30] sm:$0xff]
        %v251 = vld [vmem:[%s205 + $0x38] sm:$0xff]
        %v252 = vld [vmem:[%s205 + $0x40] sm:$0xff]
        %v253 = vld [vmem:[%s205 + $0x48] sm:$0xff]
        %v254 = vld [vmem:[%s205 + $0x50] sm:$0xff]
        %v255 = vld [vmem:[%s205 + $0x58] sm:$0xff]
        %v256 = vld [vmem:[%s205 + $0x60] sm:$0xff]
        %v257 = vld [vmem:[%s205 + $0x68] sm:$0xff]
        %v258 = vld [vmem:[%s205 + $0x70] sm:$0xff]
        %v259 = vld [vmem:[%s205 + $0x78] sm:$0xff]
        %260 = vmatprep.subr.mxu0 0.0
        %261 = vmatpush1.xpose.msra.mxu0 %v244
        %262 = vmatprep.subr.mxu0 0.0
        %263 = vmatpush1.xpose.msra.mxu0 %v245
        %264 = vmatprep.subr.mxu0 0.0
        %265 = vmatpush1.xpose.msra.mxu0 %v246
        %266 = vmatprep.subr.mxu0 0.0
        %267 = vmatpush1.xpose.msra.mxu0 %v247
        %268 = vmatprep.subr.mxu0 0.0
        %269 = vmatpush1.xpose.msra.mxu0 %v248
        %270 = vmatprep.subr.mxu0 0.0
        %271 = vmatpush1.xpose.msra.mxu0 %v249
        %272 = vmatprep.subr.mxu0 0.0
        %273 = vmatpush1.xpose.msra.mxu0 %v250
        %274 = vmatprep.subr.mxu0 0.0
        %275 = vmatpush1.xpose.msra.mxu0 %v251
        %276 = vmatprep.subr.mxu0 0.0
        %277 = vmatpush1.xpose.msra.mxu0 %v252
        %278 = vmatprep.subr.mxu0 0.0
        %279 = vmatpush1.xpose.msra.mxu0 %v253
        %280 = vmatprep.subr.mxu0 0.0
        %281 = vmatpush1.xpose.msra.mxu0 %v254
        %282 = vmatprep.subr.mxu0 0.0
        %283 = vmatpush1.xpose.msra.mxu0 %v255
        %284 = vmatprep.subr.mxu0 0.0
        %285 = vmatpush1.xpose.msra.mxu0 %v256
        %286 = vmatprep.subr.mxu0 0.0
        %287 = vmatpush1.xpose.msra.mxu0 %v257
        %288 = vmatprep.subr.mxu0 0.0
        %289 = vmatpush1.xpose.msra.mxu0 %v258
        %290 = vmatprep.subr.mxu0 0.0
        %291 = vmatpush1.xpose.msra.mxu0 %v259
        %292 = vmatprep.subr.mxu0 0.0
        %293 = vmatpush1.xpose.msra.mxu0 0.0
        %294 = vmatprep.subr.mxu0 0.0
        %295 = vmatpush1.xpose.msra.mxu0 0.0
        %296 = vmatprep.subr.mxu0 0.0
        %297 = vmatpush1.xpose.msra.mxu0 0.0
        %298 = vmatprep.subr.mxu0 0.0
        %299 = vmatpush1.xpose.msra.mxu0 0.0
        %300 = vmatprep.subr.mxu0 0.0
        %301 = vmatpush1.xpose.msra.mxu0 0.0
        %302 = vmatprep.subr.mxu0 0.0
        %303 = vmatpush1.xpose.msra.mxu0 0.0
        %304 = vmatprep.subr.mxu0 0.0
        %305 = vmatpush1.xpose.msra.mxu0 0.0
        %306 = vmatprep.subr.mxu0 0.0
        %307 = vmatpush1.xpose.msra.mxu0 0.0
        %308 = vmatprep.subr.mxu0 0.0
        %309 = vmatpush1.xpose.msra.mxu0 0.0
        %310 = vmatprep.subr.mxu0 0.0
        %311 = vmatpush1.xpose.msra.mxu0 0.0
        %312 = vmatprep.subr.mxu0 0.0
        %313 = vmatpush1.xpose.msra.mxu0 0.0
        %314 = vmatprep.subr.mxu0 0.0
        %315 = vmatpush1.xpose.msra.mxu0 0.0
        %316 = vmatprep.subr.mxu0 0.0
        %317 = vmatpush1.xpose.msra.mxu0 0.0
        %318 = vmatprep.subr.mxu0 0.0
        %319 = vmatpush1.xpose.msra.mxu0 0.0
        %320 = vmatprep.subr.mxu0 0.0
        %321 = vmatpush1.xpose.msra.mxu0 0.0
        %322 = vmatprep.subr.mxu0 0.0
        %323 = vmatpush1.xpose.msra.mxu0 0.0
        %324 = vmatprep.mubr.f32.mxu0 0.0
        %325 = vmatmul.mubr.f32.gmra.mrb[0].mxu0 %v242
        %v326 = vpop.f32.mrb[0].mxu0
        %v327 = vadd.f32 0.0, %v326
        %v328 = vpop.f32.mrb[0].mxu0
        %329 = vmatprep.mubr.f32.mxu0 0.0
        %330 = vmatmul.mubr.f32.gmra.mrb[0].mxu0 %v243
        %v331 = vpop.f32.mrb[0].mxu0
        %v332 = vadd.f32 0.0, %v331
        %v333 = vpop.f32.mrb[0].mxu0
        %334 = vdwg.mxu0
        %v335 = vadd.f32 %v240, %v327
        %v336 = vadd.f32 %v241, %v332
        %337 = vst [vmem:[#allocation2] sm:$0xff] %v335
        %338 = vst [vmem:[#allocation2 + $0x8] sm:$0xff] %v336
        %p339 = scmp.eq.s32.totalorder %s29, 1
        // Predicated region
        $region41: #{tpu_custom_call.1} parent=27 // pred_check
          %p340 = pneg %p339
        $region42: #{tpu_custom_call.1} parent=27 // pred_check_branch
          %342 = sbr.rel (%p340) target = $region44
        $region43: #{tpu_custom_call.1} parent=27 // pred_region
          %v343 = vld [vmem:[#allocation2] sm:$0xff]
          %v344 = vld [vmem:[#allocation2 + $0x8] sm:$0xff]
          %345 = vst [vmem:[%s230] sm:$0xff] %v343
          %346 = vst [vmem:[%s230 + $0x8] sm:$0xff] %v344
        $region44: #{tpu_custom_call.1} parent=27 // pred_fallthru
          _
        %s347 = sand.u32 %s107, 1
        %s348 = scalar_lea.sflag [#allocation5], %s347
        %s349 = sand.u32 %s107, 1
        %s350 = smul.addr %s349, 16
        %s351 = scalar_lea.vmem [#allocation8], %s350
        // Predicated region
        $region45: #{tpu_custom_call.1} parent=27 // pred_check
          %p352 = pneg %p117
        $region46: #{tpu_custom_call.1} parent=27 // pred_check_branch
          %354 = sbr.rel (%p352) target = $region48
        $region47: #{tpu_custom_call.1} parent=27 // pred_region
          %s355 = smul.u32 2, %s27
          %s357 = ssub.s32 256, 256
          %358 = vsyncadd %s348, %s357
          %s359 = smul.addr %s355, 2
          %s360 = sadd.s32 %s28, %s359
          %s361 = smul.addr %s360, 128
          %s362 = scalar_lea.hbm %s2, %s361
          %s363 = sshll.u32 %s351, 4
          %s364 = int_to_ptr.vmem [resolvable:$true] %s363
          %369 = dma.vmem_to_hbm [thread:$0]  %s364, 256, %s362, %s348, 128, 256, 8
        $region48: #{tpu_custom_call.1} parent=27 // pred_fallthru
          _
      $region28: #{tpu_custom_call.1} parent=5 // pred_fallthru
        _
      %p370 = scmp.le.s32.totalorder 2, %s17
      // Predicated region
      $region49: #{tpu_custom_call.1} parent=5 // pred_check
        %p371 = pneg %p370
      $region50: #{tpu_custom_call.1} parent=5 // pred_check_branch
        %373 = sbr.rel (%p371) target = $region52
      $region51: #{tpu_custom_call.1} parent=5 // pred_region
        %s374 = ssub.s32 %s17, 2
        // Predicated region
        $region53: #{tpu_custom_call.1} parent=51 // pred_check
          %p375 = pneg %p123
        $region54: #{tpu_custom_call.1} parent=51 // pred_check_branch
          %377 = sbr.rel (%p375) target = $region56
        $region55: #{tpu_custom_call.1} parent=51 // pred_region
          %s378 = sand.u32 %s108, 1
          %s379 = scalar_lea.sflag [#allocation5], %s378
          %s380 = sand.u32 %s108, 1
          %s381 = smul.addr %s380, 16
          %s382 = scalar_lea.vmem [#allocation8], %s381
          %383 = dma.done %s379, 256
        $region56: #{tpu_custom_call.1} parent=51 // pred_fallthru
          _
      $region52: #{tpu_custom_call.1} parent=5 // pred_fallthru
        _
    $region6: #{tpu_custom_call.1} parent=1 // loop_footer
      %s21 = sadd.s32 1, %s17
    $region7: #{tpu_custom_call.1} parent=1 // loop_footer_branch
      %16 = sbr.rel target = $region3
    $region8: #{tpu_custom_call.1} parent=1 // loop_exit
      _
    %384 = vsyncpa [#allocation4], 1
    %s385 = scalar_lea.sflag [#allocation4], 1
    %386 = vsyncpa %s385, 1
    %387 = vsyncpa [#allocation7], 1
    %s388 = scalar_lea.sflag [#allocation7], 1
    %389 = vsyncpa %s388, 1
    %390 = vsyncpa [#allocation5], 1
    %s391 = scalar_lea.sflag [#allocation5], 1
    %392 = vsyncpa %s391, 1

</llo_original>
